<compile_context>
chip_gen: v7x
topology: tpu7x:2x2x1
jax: 0.10.0
libtpu: 0.0.40
codegen_flags: <defaults>
</compile_context>

<pallas_src>
import jax
import jax.numpy as jnp
from jax import lax
from jax.experimental import pallas as pl
from jax.experimental.pallas import tpu as pltpu


_VMEM_BUDGET = 20 * 1024 * 1024   # conservative tile budget (fits v7x scoped 32 MiB)
_VMEM_LIMIT = 32 * 1024 * 1024    # explicit scoped-VMEM limit, safe on v5e/v6e/v7x


def _cdiv(a, b):
    return (a + b - 1) // b


def _choose_hw_tile(hw, max_tile, fits):
    """Largest HW tile that is lane-legal (== hw, or a multiple of 128) and fits VMEM."""
    cands = []
    if hw <= max_tile:
        cands.append(hw)
    t = (min(max_tile, hw) // 128) * 128
    while t >= 128:
        cands.append(t)
        t = (t // 2 // 128) * 128
    cands = sorted(set(cands), reverse=True)
    if not cands:
        return hw                      # hw < 128: single full-extent tile
    for c in cands:
        if fits(c):
            return c
    return cands[-1]


def _make_conv_stats_kernel(hw, thw):
    """1x1 conv tile + per-tile BN partial sums, NCHW layout (channels on sublanes)."""
    ragged = (hw % thw) != 0

    def kernel(x_ref, w_ref, y_ref, sum_ref, ssq_ref):
        # x_ref: (C_in, thw), w_ref: (C_out, C_in) resident,
        # y_ref: (C_out, thw), sum_ref/ssq_ref: (C_out, 1)
        y = lax.dot_general(
            w_ref[...], x_ref[...],
            dimension_numbers=(((1,), (0,)), ((), ())),
            preferred_element_type=jnp.float32,
        )
        y_ref[...] = y.astype(y_ref.dtype)
        if ragged:
            # Mask columns past H*W (last tile only has garbage there); the
            # corresponding output columns are never written back by Pallas.
            col = (lax.broadcasted_iota(jnp.int32, y.shape, 1)
                   + pl.program_id(1) * thw)
            y = jnp.where(col < hw, y, 0.0)
        # Lane-axis reductions (XLU). f32 accumulator; E[y^2]-E[y]^2 in f32 is
        # adequate here (values are zero-mean-ish post conv); see review note.
        sum_ref[...] = jnp.sum(y, axis=1, keepdims=True)
        ssq_ref[...] = jnp.sum(y * y, axis=1, keepdims=True)

    return kernel


def _bn_apply_kernel(y_ref, scale_ref, shift_ref, o_ref):
    """Per-channel affine: out = y * scale + shift (scale/shift are (C_out,1))."""
    o_ref[...] = (y_ref[...].astype(jnp.float32) * scale_ref[...]
                  + shift_ref[...]).astype(o_ref.dtype)


def embed_forward(x, conv_weight, gamma, beta, *, eps=1e-5,
                  conv_hw_tile=1024, apply_hw_tile=2048):
    """Pallas implementation of Embed.forward(x) (training-mode BatchNorm)."""
    B, C_in, H, W = x.shape
    C_out = conv_weight.shape[0]
    assert conv_weight.shape[1] == C_in
    hw = H * W

    in_dt = x.dtype
    y_dt = in_dt                       # bf16 in -> bf16 intermediate (halves HBM stream)
    isz_x = jnp.dtype(in_dt).itemsize
    isz_y = jnp.dtype(y_dt).itemsize

    w2d = conv_weight.reshape(C_out, C_in).astype(in_dt)
    x3 = x.reshape(B, C_in, hw)        # free reshape, stays NCHW

    # ---- pass 1 tile selection (double-buffered x / y, resident weight) -------
    def conv_fits(thw):
        need = (2 * C_in * thw * isz_x          # x, double buffered
                + 2 * C_out * C_in * isz_x      # weight (default double buffer)
                + 2 * C_out * thw * isz_y       # y, double buffered
                + 4 * C_out * 4 * 2)            # stats (tiny)
        return need <= _VMEM_BUDGET

    thw1 = _choose_hw_tile(hw, conv_hw_tile, conv_fits)
    # Keep >= 2 grid steps when possible so both v7x TensorCores get work.
    if B * _cdiv(hw, thw1) < 2 and hw >= 256:
        thw1 = ((_cdiv(hw, 2) + 127) // 128) * 128
    nt1 = _cdiv(hw, thw1)

    cost = pl.CostEstimate(
        flops=2 * B * hw * C_in * C_out,
        transcendentals=0,
        bytes_accessed=(B * hw * C_in * isz_x + C_out * C_in * isz_x
                        + B * hw * C_out * isz_y + B * nt1 * C_out * 8),
    )

    y3, sums, ssqs = pl.pallas_call(
        _make_conv_stats_kernel(hw, thw1),
        out_shape=(
            jax.ShapeDtypeStruct((B, C_out, hw), y_dt),
            jax.ShapeDtypeStruct((B, nt1, C_out, 1), jnp.float32),
            jax.ShapeDtypeStruct((B, nt1, C_out, 1), jnp.float32),
        ),
        grid_spec=pltpu.PrefetchScalarGridSpec(
            num_scalar_prefetch=0,
            grid=(B, nt1),
            in_specs=[
                pl.BlockSpec((None, C_in, thw1), lambda b, j: (b, 0, j)),
                pl.BlockSpec((C_out, C_in), lambda b, j: (0, 0)),   # resident weight
            ],
            out_specs=(
                pl.BlockSpec((None, C_out, thw1), lambda b, j: (b, 0, j)),
                pl.BlockSpec((None, None, C_out, 1), lambda b, j: (b, j, 0, 0)),
                pl.BlockSpec((None, None, C_out, 1), lambda b, j: (b, j, 0, 0)),
            ),
        ),
        compiler_params=pltpu.CompilerParams(
            dimension_semantics=("parallel", "parallel"),
            vmem_limit_bytes=_VMEM_LIMIT,
        ),
        cost_estimate=cost,
    )(x3, w2d)

    # ---- tiny per-channel math in the wrapper (fold BN into scale/shift) ------
    n_elem = jnp.float32(B * hw)
    total_s = jnp.sum(sums, axis=(0, 1)).reshape(C_out)
    total_q = jnp.sum(ssqs, axis=(0, 1)).reshape(C_out)
    mean = total_s / n_elem
    var = jnp.maximum(total_q / n_elem - mean * mean, 0.0)     # biased variance
    inv_std = lax.rsqrt(var + jnp.float32(eps))
    g = gamma.astype(jnp.float32)
    scale = (g * inv_std).reshape(C_out, 1)
    shift = (beta.astype(jnp.float32) - mean * g * inv_std).reshape(C_out, 1)

    # ---- pass 2: per-channel affine, already in NCHW layout -------------------
    def apply_fits(thw):
        need = 2 * C_out * thw * (isz_y + isz_x) + 4 * C_out * 4
        return need <= _VMEM_BUDGET

    thw2 = _choose_hw_tile(hw, apply_hw_tile, apply_fits)
    nt2 = _cdiv(hw, thw2)

    out3 = pl.pallas_call(
        _bn_apply_kernel,
        out_shape=jax.ShapeDtypeStruct((B, C_out, hw), in_dt),
        grid_spec=pltpu.PrefetchScalarGridSpec(
            num_scalar_prefetch=0,
            grid=(B, nt2),
            in_specs=[
                pl.BlockSpec((None, C_out, thw2), lambda b, j: (b, 0, j)),
                pl.BlockSpec((C_out, 1), lambda b, j: (0, 0)),
                pl.BlockSpec((C_out, 1), lambda b, j: (0, 0)),
            ],
            out_specs=pl.BlockSpec((None, C_out, thw2), lambda b, j: (b, 0, j)),
        ),
        compiler_params=pltpu.CompilerParams(
            dimension_semantics=("parallel", "parallel"),
            vmem_limit_bytes=_VMEM_LIMIT,
        ),
    )(y3, scale, shift)

    return out3.reshape(B, C_out, H, W)        # free reshape, already NCHW


def _reference_embed(x, conv_weight, gamma, beta, eps=1e-5):
    """Pure-JAX reference of Embed.forward (1x1 conv + training-mode BN)."""
    C_out = conv_weight.shape[0]
    w2d = conv_weight.reshape(C_out, -1)
    y = jnp.einsum('bchw,oc->bohw', x, w2d)
    mean = jnp.mean(y, axis=(0, 2, 3), keepdims=True)
    var = jnp.mean((y - mean) ** 2, axis=(0, 2, 3), keepdims=True)   # biased
    y_hat = (y - mean) / jnp.sqrt(var + eps)
    return y_hat * gamma.reshape(1, C_out, 1, 1) + beta.reshape(1, C_out, 1, 1)


if __name__ == "__main__":
    key = jax.random.PRNGKey(0)
    k1, k2, k3, k4 = jax.random.split(key, 4)

    # Shapes consistent with Embed(dim_in=256, dim_out=128) on a small map.
    B, C_in, C_out, H, W = 2, 256, 128, 16, 16
    x = jax.random.normal(k1, (B, C_in, H, W), dtype=jnp.float32)
    conv_w = jax.random.normal(k2, (C_out, C_in, 1, 1), dtype=jnp.float32) * 0.05
    gamma = 1.0 + 0.1 * jax.random.normal(k3, (C_out,), dtype=jnp.float32)
    beta = 0.1 * jax.random.normal(k4, (C_out,), dtype=jnp.float32)

    out = jax.block_until_ready(embed_forward(x, conv_w, gamma, beta))
    ref = jax.block_until_ready(_reference_embed(x, conv_w, gamma, beta))

    assert out.shape == ref.shape, (out.shape, ref.shape)
    max_err = float(jnp.max(jnp.abs(out - ref)))
    assert jnp.allclose(out, ref, rtol=2e-3, atol=2e-3), max_err

    print("KERNEL_OK")
</pallas_src>

<mosaic_0001>
module attributes {stable_mosaic.version = 11 : i64} {
  func.func @kernel(%arg0: i32, %arg1: i32, %arg2: memref<1x256x256xf32, #tpu.memory_space<vmem>>, %arg3: memref<128x256xf32, #tpu.memory_space<vmem>>, %arg4: memref<1x128x256xf32, #tpu.memory_space<vmem>>, %arg5: memref<1x1x128x1xf32, #tpu.memory_space<vmem>>, %arg6: memref<1x1x128x1xf32, #tpu.memory_space<vmem>>) attributes {dimension_semantics = [#tpu.dimension_semantics<parallel>, #tpu.dimension_semantics<parallel>], iteration_bounds = array<i64: 2, 1>, scalar_prefetch = 0 : i64, scratch_operands = 0 : i64, tpu.core_type = #tpu.core_type<tc>, window_params = [{transform_indices = @transform_0, window_bounds = array<i64: 1, 256, 256>}, {pipeline_mode = #tpu.pipeline_mode<synchronous>, transform_indices = @transform_1, window_bounds = array<i64: 128, 256>}, {transform_indices = @transform_2, window_bounds = array<i64: 1, 128, 256>}, {transform_indices = @transform_3, window_bounds = array<i64: 1, 1, 128, 1>}, {transform_indices = @transform_4, window_bounds = array<i64: 1, 1, 128, 1>}]} {
    %c0 = arith.constant 0 : index
    %c0_0 = arith.constant 0 : index
    %0 = vector.load %arg3[%c0, %c0_0] : memref<128x256xf32, #tpu.memory_space<vmem>>, vector<128x256xf32>
    %c0_1 = arith.constant 0 : index
    %c0_2 = arith.constant 0 : index
    %c0_3 = arith.constant 0 : index
    %1 = vector.load %arg2[%c0_1, %c0_2, %c0_3] : memref<1x256x256xf32, #tpu.memory_space<vmem>>, vector<1x256x256xf32>
    %2 = vector.shape_cast %1 : vector<1x256x256xf32> to vector<256x256xf32>
    %cst = arith.constant dense<0.000000e+00> : vector<128x256xf32>
    %3 = tpu.matmul %0, %2, %cst {dimension_numbers = #tpu.dot_dimension_numbers<[1], [0], [0], [1], [0, 0, 1, 1], [], []>} : vector<128x256xf32>, vector<256x256xf32>, vector<128x256xf32> -> vector<128x256xf32>
    %c0_4 = arith.constant 0 : index
    %c0_5 = arith.constant 0 : index
    %c0_6 = arith.constant 0 : index
    %4 = vector.load %arg4[%c0_4, %c0_5, %c0_6] : memref<1x128x256xf32, #tpu.memory_space<vmem>>, vector<1x128x256xf32>
    %5 = vector.shape_cast %4 : vector<1x128x256xf32> to vector<128x256xf32>
    %6 = vector.shape_cast %3 : vector<128x256xf32> to vector<1x128x256xf32>
    tpu.vector_store %arg4[%c0_4, %c0_5, %c0_6], %6 {strides = array<i32>} : memref<1x128x256xf32, #tpu.memory_space<vmem>>, vector<1x128x256xf32>,
    %cst_7 = arith.constant dense<0.000000e+00> : vector<128xf32>
    %7 = vector.multi_reduction <add>, %3, %cst_7 [1] : vector<128x256xf32> to vector<128xf32>
    %8 = vector.shape_cast %7 : vector<128xf32> to vector<128x1xf32>
    %c0_8 = arith.constant 0 : index
    %c0_9 = arith.constant 0 : index
    %c0_10 = arith.constant 0 : index
    %c0_11 = arith.constant 0 : index
    %9 = vector.load %arg5[%c0_8, %c0_9, %c0_10, %c0_11] : memref<1x1x128x1xf32, #tpu.memory_space<vmem>>, vector<1x1x128x1xf32>
    %10 = vector.shape_cast %9 : vector<1x1x128x1xf32> to vector<128x1xf32>
    %11 = vector.shape_cast %8 : vector<128x1xf32> to vector<1x1x128x1xf32>
    tpu.vector_store %arg5[%c0_8, %c0_9, %c0_10, %c0_11], %11 {strides = array<i32>} : memref<1x1x128x1xf32, #tpu.memory_space<vmem>>, vector<1x1x128x1xf32>,
    %12 = arith.mulf %3, %3 : vector<128x256xf32>
    %cst_12 = arith.constant dense<0.000000e+00> : vector<128xf32>
    %13 = vector.multi_reduction <add>, %12, %cst_12 [1] : vector<128x256xf32> to vector<128xf32>
    %14 = vector.shape_cast %13 : vector<128xf32> to vector<128x1xf32>
    %c0_13 = arith.constant 0 : index
    %c0_14 = arith.constant 0 : index
    %c0_15 = arith.constant 0 : index
    %c0_16 = arith.constant 0 : index
    %15 = vector.load %arg6[%c0_13, %c0_14, %c0_15, %c0_16] : memref<1x1x128x1xf32, #tpu.memory_space<vmem>>, vector<1x1x128x1xf32>
    %16 = vector.shape_cast %15 : vector<1x1x128x1xf32> to vector<128x1xf32>
    %17 = vector.shape_cast %14 : vector<128x1xf32> to vector<1x1x128x1xf32>
    tpu.vector_store %arg6[%c0_13, %c0_14, %c0_15, %c0_16], %17 {strides = array<i32>} : memref<1x1x128x1xf32, #tpu.memory_space<vmem>>, vector<1x1x128x1xf32>,
    return
  }
  func.func @transform_0(%arg0: i32, %arg1: i32) -> (i32, i32, i32) {
    %c0_i32 = arith.constant 0 : i32
    %c0_i32_0 = arith.constant 0 : i32
    return %arg0, %c0_i32, %arg1 : i32, i32, i32
  }
  func.func @transform_1(%arg0: i32, %arg1: i32) -> (i32, i32) {
    %c0_i32 = arith.constant 0 : i32
    %c0_i32_0 = arith.constant 0 : i32
    %c0_i32_1 = arith.constant 0 : i32
    return %c0_i32, %c0_i32_0 : i32, i32
  }
  func.func @transform_2(%arg0: i32, %arg1: i32) -> (i32, i32, i32) {
    %c0_i32 = arith.constant 0 : i32
    %c0_i32_0 = arith.constant 0 : i32
    return %arg0, %c0_i32, %arg1 : i32, i32, i32
  }
  func.func @transform_3(%arg0: i32, %arg1: i32) -> (i32, i32, i32, i32) {
    %c0_i32 = arith.constant 0 : i32
    %c0_i32_0 = arith.constant 0 : i32
    %c0_i32_1 = arith.constant 0 : i32
    return %arg0, %arg1, %c0_i32, %c0_i32_0 : i32, i32, i32, i32
  }
  func.func @transform_4(%arg0: i32, %arg1: i32) -> (i32, i32, i32, i32) {
    %c0_i32 = arith.constant 0 : i32
    %c0_i32_0 = arith.constant 0 : i32
    %c0_i32_1 = arith.constant 0 : i32
    return %arg0, %arg1, %c0_i32, %c0_i32_0 : i32, i32, i32, i32
  }
}

</mosaic_0001>

<llo_original>
// kernel: tpu_custom_call.1
$region0: #{tpu_custom_call.1}
  #allocation0 [shape = 'u32[]', space=smem, size = 0x4, offset = 0x4, fixed_abs, tag = 'smem constant byte address 0x4 - core index']
  #allocation1 [shape = 'u32[144,128]{1,0:T(1,128)}', space=vmem, size = 0x12000, scoped, tag = 'internal scratch']
  %s0 = inlined_call_operand.hbm [shape: f32[2,256,256], index: 0, kind: input, shape index: {}]
  %s1 = inlined_call_operand.hbm [shape: f32[128,256], index: 1, kind: input, shape index: {}]
  %s2 = inlined_call_operand.hbm [shape: f32[2,128,256], index: 2, kind: output, shape index: {0}]
  %s3 = inlined_call_operand.vmem [shape: f32[2,1,128,1], index: 3, kind: output, shape index: {1}]
  %s4 = inlined_call_operand.vmem [shape: f32[2,1,128,1], index: 4, kind: output, shape index: {2}]
  %5 = xla_tuple %s2, %s3, %s4
  %s6 = sld [smem:[#allocation0]]
  $region65: #{tpu_custom_call.1} parent=0
    _
  %s8 = ssub.s32 1, %s6
  %s9 = scalar_select 0, %s8, %s6
  $region1: #{tpu_custom_call.1} parent=0
    #allocation2 [shape = 'u8[524288]{0}', space=vmem, size = 0x80000, scoped, tag = 'input window, operand 0']
    #allocation3 [shape = 's32[2]{0}', space=sflag, size = 0x8, scoped, tag = 'scoped memory for tpu_custom_call.1']
    #allocation4 [shape = 's32[2]{0}', space=sflag, size = 0x8, scoped, tag = 'scoped memory for tpu_custom_call.1']
    #allocation5 [shape = 'u8[131072]{0}', space=vmem, size = 0x20000, scoped, tag = 'input window, operand 1, single buffered']
    #allocation6 [shape = 's32[1]{0}', space=sflag, size = 0x4, scoped, tag = 'scoped memory for tpu_custom_call.1']
    #allocation7 [shape = 'u8[262144]{0}', space=vmem, size = 0x40000, scoped, tag = 'output window, operand 0']
    %10 = vsyncpa [#allocation3], 0
    %s11 = scalar_lea.sflag [#allocation3], 1
    %12 = vsyncpa %s11, 0
    %13 = vsyncpa [#allocation6], 0
    %14 = vsyncpa [#allocation4], 0
    %s15 = scalar_lea.sflag [#allocation4], 1
    %16 = vsyncpa %s15, 0
    loop: start=0, step=1, limit=4
    $region2: #{tpu_custom_call.1} parent=1 // loop_pre_header
      _
    $region3: #{tpu_custom_call.1} parent=1 // loop_header
      %s18 = sphi 0, %s22
      %p19 = scmp.ge.s32.totalorder %s18, 4
      %s25 = sphi 0, %s37
      %s26 = sphi 0, %s33
      %s27 = sphi 0, %s25
      %s28 = sphi 0, %s26
      %s29 = sphi 0, %s27
      %s30 = sphi 0, %s28
      %s42 = sphi 0, %s44
      %s45 = sphi 0, %s42
      %s46 = sphi 0, %s45
      %s62 = sphi 0, %s46
      %s66 = sphi 0, %s66
      %s68 = sphi 0, %s66
      %s69 = sphi 0, %s68
      %s83 = sphi 0, %s69
      %s91 = sphi 0, %s93
      %s94 = sphi 0, %s91
      %s95 = sphi 0, %s94
      %s111 = sphi 0, %s95
      %s119 = sphi 0, %s121
      %s122 = sphi 0, %s119
      %s123 = sphi 0, %s122
      %s139 = sphi 0, %s123
      %s147 = sphi 0, %s149
      %s150 = sphi 0, %s147
      %s151 = sphi 0, %s150
      %s167 = sphi 0, %s151
    $region4: #{tpu_custom_call.1} parent=1 // loop_header_branch
      %21 = sbr.rel (%p19) target = $region8
    $region5: #{tpu_custom_call.1} parent=1 // loop_body
      %s23 = ssub.s32 %s18, 1
      %s24 = ssub.s32 %s18, 2
      %s31 = sadd.s32 1, %s26
      %p32 = scmp.ge.s32.totalorder %s31, 1
      %s33 = scalar_select %p32, 0, %s31
      %s34 = sadd.s32 1, %s25
      %s35 = scalar_select %p32, %s34, %s25
      %p36 = scmp.ge.s32.totalorder %s35, 2
      %s37 = scalar_select %p36, 0, %s35
      %s38 = ssub.s32 %s25, %s37
      %s39 = ssub.s32 %s26, %s33
      %s40 = sor.u32 %s38, %s39
      %p41 = scmp.eq.s32.totalorder %s40, 0
      %s43 = sadd.s32 %s42, 1
      %s44 = scalar_select %p41, %s42, %s43
      %p47 = pneg %p41
      %p48 = scmp.eq.s32.totalorder %s18, 1
      %p49 = por %p47, %p48
      %p50 = scmp.ne.s32.totalorder %s42, %s45
      %p51 = scmp.eq.s32.totalorder %s18, 0
      %p52 = por %p50, %p51
      %p53 = scmp.ne.s32.totalorder %s42, %s45
      %p54 = scmp.eq.s32.totalorder %s23, 1
      %p55 = por %p53, %p54
      %p56 = scmp.ne.s32.totalorder %s45, %s46
      %p57 = scmp.eq.s32.totalorder %s23, 0
      %p58 = por %p56, %p57
      %p59 = scmp.ne.s32.totalorder %s45, %s46
      %p60 = scmp.eq.s32.totalorder %s24, 1
      %p61 = por %p59, %p60
      %p63 = scmp.ne.s32.totalorder %s46, %s62
      %p64 = scmp.eq.s32.totalorder %s24, 0
      %p65 = por %p63, %p64
      %s67 = sadd.s32 %s66, 1
      %p70 = scmp.eq.s32.totalorder %s18, 1
      %p71 = scmp.ne.s32.totalorder %s66, %s68
      %p72 = scmp.eq.s32.totalorder %s18, 0
      %p73 = por %p71, %p72
      %p74 = scmp.ne.s32.totalorder %s66, %s68
      %p75 = scmp.eq.s32.totalorder %s23, 1
      %p76 = por %p74, %p75
      %p77 = scmp.ne.s32.totalorder %s68, %s69
      %p78 = scmp.eq.s32.totalorder %s23, 0
      %p79 = por %p77, %p78
      %p80 = scmp.ne.s32.totalorder %s68, %s69
      %p81 = scmp.eq.s32.totalorder %s24, 1
      %p82 = por %p80, %p81
      %p84 = scmp.ne.s32.totalorder %s69, %s83
      %p85 = scmp.eq.s32.totalorder %s24, 0
      %p86 = por %p84, %p85
      %s87 = ssub.s32 %s25, %s37
      %s88 = ssub.s32 %s26, %s33
      %s89 = sor.u32 %s87, %s88
      %p90 = scmp.eq.s32.totalorder %s89, 0
      %s92 = sadd.s32 %s91, 1
      %s93 = scalar_select %p90, %s91, %s92
      %p96 = pneg %p90
      %p97 = scmp.eq.s32.totalorder %s18, 1
      %p98 = por %p96, %p97
      %p99 = scmp.ne.s32.totalorder %s91, %s94
      %p100 = scmp.eq.s32.totalorder %s18, 0
      %p101 = por %p99, %p100
      %p102 = scmp.ne.s32.totalorder %s91, %s94
      %p103 = scmp.eq.s32.totalorder %s23, 1
      %p104 = por %p102, %p103
      %p105 = scmp.ne.s32.totalorder %s94, %s95
      %p106 = scmp.eq.s32.totalorder %s23, 0
      %p107 = por %p105, %p106
      %p108 = scmp.ne.s32.totalorder %s94, %s95
      %p109 = scmp.eq.s32.totalorder %s24, 1
      %p110 = por %p108, %p109
      %p112 = scmp.ne.s32.totalorder %s95, %s111
      %p113 = scmp.eq.s32.totalorder %s24, 0
      %p114 = por %p112, %p113
      %s115 = ssub.s32 %s25, %s37
      %s116 = ssub.s32 %s26, %s33
      %s117 = sor.u32 %s115, %s116
      %p118 = scmp.eq.s32.totalorder %s117, 0
      %s120 = sadd.s32 %s119, 1
      %s121 = scalar_select %p118, %s119, %s120
      %p124 = pneg %p118
      %p125 = scmp.eq.s32.totalorder %s18, 1
      %p126 = por %p124, %p125
      %p127 = scmp.ne.s32.totalorder %s119, %s122
      %p128 = scmp.eq.s32.totalorder %s18, 0
      %p129 = por %p127, %p128
      %p130 = scmp.ne.s32.totalorder %s119, %s122
      %p131 = scmp.eq.s32.totalorder %s23, 1
      %p132 = por %p130, %p131
      %p133 = scmp.ne.s32.totalorder %s122, %s123
      %p134 = scmp.eq.s32.totalorder %s23, 0
      %p135 = por %p133, %p134
      %p136 = scmp.ne.s32.totalorder %s122, %s123
      %p137 = scmp.eq.s32.totalorder %s24, 1
      %p138 = por %p136, %p137
      %p140 = scmp.ne.s32.totalorder %s123, %s139
      %p141 = scmp.eq.s32.totalorder %s24, 0
      %p142 = por %p140, %p141
      %s143 = ssub.s32 %s25, %s37
      %s144 = ssub.s32 %s26, %s33
      %s145 = sor.u32 %s143, %s144
      %p146 = scmp.eq.s32.totalorder %s145, 0
      %s148 = sadd.s32 %s147, 1
      %s149 = scalar_select %p146, %s147, %s148
      %p152 = pneg %p146
      %p153 = scmp.eq.s32.totalorder %s18, 1
      %p154 = por %p152, %p153
      %p155 = scmp.ne.s32.totalorder %s147, %s150
      %p156 = scmp.eq.s32.totalorder %s18, 0
      %p157 = por %p155, %p156
      %p158 = scmp.ne.s32.totalorder %s147, %s150
      %p159 = scmp.eq.s32.totalorder %s23, 1
      %p160 = por %p158, %p159
      %p161 = scmp.ne.s32.totalorder %s150, %s151
      %p162 = scmp.eq.s32.totalorder %s23, 0
      %p163 = por %p161, %p162
      %p164 = scmp.ne.s32.totalorder %s150, %s151
      %p165 = scmp.eq.s32.totalorder %s24, 1
      %p166 = por %p164, %p165
      %p168 = scmp.ne.s32.totalorder %s151, %s167
      %p169 = scmp.eq.s32.totalorder %s24, 0
      %p170 = por %p168, %p169
      %p171 = scmp.le.s32.totalorder 1, %s18
      %p172 = scmp.lt.s32.totalorder %s18, 3
      %p173 = pnand %p171, %p172
      %p174 = pneg %p173
      // Predicated region
      $region9: #{tpu_custom_call.1} parent=5 // pred_check
        _
      $region10: #{tpu_custom_call.1} parent=5 // pred_check_branch
        %176 = sbr.rel (%p173) target = $region12
      $region11: #{tpu_custom_call.1} parent=5 // pred_region
        %s177 = ssub.s32 %s18, 1
        // Predicated region
        $region13: #{tpu_custom_call.1} parent=11 // pred_check
          %p178 = pneg %p79
        $region14: #{tpu_custom_call.1} parent=11 // pred_check_branch
          %180 = sbr.rel (%p178) target = $region16
        $region15: #{tpu_custom_call.1} parent=11 // pred_region
          %s182 = ssub.s32 4096, 4096
          %183 = vsyncadd [#allocation6], %s182
          %s184 = sshll.u32 [#allocation5], 4
          %s185 = int_to_ptr.vmem [resolvable:$true] %s184
          %190 = dma.hbm_to_vmem [thread:$0]  %s1, 4096, %s185, [#allocation6], 256, 256, 16
        $region16: #{tpu_custom_call.1} parent=11 // pred_fallthru
          _
      $region12: #{tpu_custom_call.1} parent=5 // pred_fallthru
        _
      %p191 = scmp.lt.s32.totalorder %s18, 2
      // Predicated region
      $region17: #{tpu_custom_call.1} parent=5 // pred_check
        %p192 = pneg %p191
      $region18: #{tpu_custom_call.1} parent=5 // pred_check_branch
        %194 = sbr.rel (%p192) target = $region20
      $region19: #{tpu_custom_call.1} parent=5 // pred_region
        // Predicated region
        $region21: #{tpu_custom_call.1} parent=19 // pred_check
          %p195 = pneg %p52
        $region22: #{tpu_custom_call.1} parent=19 // pred_check_branch
          %197 = sbr.rel (%p195) target = $region24
        $region23: #{tpu_custom_call.1} parent=19 // pred_region
          %s198 = sand.u32 %s42, 1
          %s199 = scalar_lea.sflag [#allocation3], %s198
          %s200 = sand.u32 %s42, 1
          %s201 = smul.addr %s200, 512
          %s202 = scalar_lea.vmem [#allocation2], %s201
          %s203 = smul.u32 2, %s26
          %s205 = ssub.s32 8192, 8192
          %206 = vsyncadd %s199, %s205
          %s207 = smul.addr %s25, 64
          %s208 = sadd.s32 %s203, %s207
          %s209 = smul.addr %s208, 128
          %s210 = scalar_lea.hbm %s0, %s209
          %s211 = sshll.u32 %s202, 4
          %s212 = int_to_ptr.vmem [resolvable:$true] %s211
          %217 = dma.hbm_to_vmem [thread:$0]  %s210, 8192, %s212, %s199, 256, 256, 16
        $region24: #{tpu_custom_call.1} parent=19 // pred_fallthru
          _
      $region20: #{tpu_custom_call.1} parent=5 // pred_fallthru
        _
      %p218 = scmp.le.s32.totalorder 1, %s18
      %p219 = scmp.lt.s32.totalorder %s18, 3
      %p220 = pnand %p218, %p219
      %p221 = pneg %p220
      // Predicated region
      $region25: #{tpu_custom_call.1} parent=5 // pred_check
        _
      $region26: #{tpu_custom_call.1} parent=5 // pred_check_branch
        %223 = sbr.rel (%p220) target = $region28
      $region27: #{tpu_custom_call.1} parent=5 // pred_region
        %s224 = ssub.s32 %s18, 1
        %s225 = sand.u32 %s45, 1
        %s226 = scalar_lea.sflag [#allocation3], %s225
        %s227 = sand.u32 %s45, 1
        %s228 = smul.addr %s227, 512
        %s229 = scalar_lea.vmem [#allocation2], %s228
        // Predicated region
        $region29: #{tpu_custom_call.1} parent=27 // pred_check
          %p230 = pneg %p58
        $region30: #{tpu_custom_call.1} parent=27 // pred_check_branch
          %232 = sbr.rel (%p230) target = $region32
        $region31: #{tpu_custom_call.1} parent=27 // pred_region
          %233 = dma.done %s226, 8192
        $region32: #{tpu_custom_call.1} parent=27 // pred_fallthru
          _
        // Predicated region
        $region33: #{tpu_custom_call.1} parent=27 // pred_check
          %p234 = pneg %p79
        $region34: #{tpu_custom_call.1} parent=27 // pred_check_branch
          %236 = sbr.rel (%p234) target = $region36
        $region35: #{tpu_custom_call.1} parent=27 // pred_region
          %237 = dma.done [#allocation6], 4096
        $region36: #{tpu_custom_call.1} parent=27 // pred_fallthru
          _
        %s238 = sand.u32 %s45, 1
        %s239 = scalar_lea.sflag [#allocation3], %s238
        %s240 = sand.u32 %s45, 1
        %s241 = smul.addr %s240, 512
        %s242 = scalar_lea.vmem [#allocation2], %s241
        %p243 = pneg %p58
        %p244 = pneg %p55
        %p245 = pneg %p79
        %p246 = pneg %p76
        %p247 = pneg %p107
        %p248 = pneg %p104
        %s249 = sand.u32 %s94, 1
        %s250 = scalar_lea.sflag [#allocation4], %s249
        %s251 = sand.u32 %s94, 1
        %s252 = smul.addr %s251, 256
        %s253 = scalar_lea.vmem [#allocation7], %s252
        %p254 = pneg %p135
        %p255 = pneg %p132
        %p256 = scmp.lt.s32.totalorder %s27, 1
        %s257 = scalar_select %p256, %s27, 1
        %p258 = scmp.lt.s32.totalorder %s28, 0
        %s259 = scalar_select %p258, %s28, 0
        %s260 = smul.addr %s259, 16
        %s261 = smul.addr %s257, 16
        %s262 = sadd.s32 %s260, %s261
        %s263 = smul.addr %s262, 8
        %s264 = scalar_lea.vmem %s3, %s263
        %p265 = pneg %p163
        %p266 = pneg %p160
        %p267 = scmp.lt.s32.totalorder %s27, 1
        %s268 = scalar_select %p267, %s27, 1
        %p269 = scmp.lt.s32.totalorder %s28, 0
        %s270 = scalar_select %p269, %s28, 0
        %s271 = smul.addr %s270, 16
        %s272 = smul.addr %s268, 16
        %s273 = sadd.s32 %s271, %s272
        %s274 = smul.addr %s273, 8
        %s275 = scalar_lea.vmem %s4, %s274
        %s276 = smul.u32 2, %s28
        %s277 = smul.u32 2, %s28
        %p278 = scmp.lt.s32.totalorder %s27, 1
        %s279 = scalar_select %p278, %s27, 1
        %p280 = scmp.lt.s32.totalorder %s28, 0
        %s281 = scalar_select %p280, %s28, 0
        %s282 = smul.addr %s281, 16
        %s283 = smul.addr %s279, 16
        %s284 = sadd.s32 %s282, %s283
        %s285 = smul.addr %s284, 8
        %s286 = scalar_lea.vmem %s3, %s285
        %p287 = scmp.lt.s32.totalorder %s27, 1
        %s288 = scalar_select %p287, %s27, 1
        %p289 = scmp.lt.s32.totalorder %s28, 0
        %s290 = scalar_select %p289, %s28, 0
        %s291 = smul.addr %s290, 16
        %s292 = smul.addr %s288, 16
        %s293 = sadd.s32 %s291, %s292
        %s294 = smul.addr %s293, 8
        %s295 = scalar_lea.vmem %s4, %s294
        %v296 = vld [vmem:[#allocation5] sm:$0xff]
        %v297 = vld [vmem:[#allocation5 + $0x8] sm:$0xff]
        %v298 = vld [vmem:[#allocation5 + $0x10] sm:$0xff]
        %v299 = vld [vmem:[#allocation5 + $0x18] sm:$0xff]
        %v300 = vld [vmem:[#allocation5 + $0x20] sm:$0xff]
        %v301 = vld [vmem:[#allocation5 + $0x28] sm:$0xff]
        %v302 = vld [vmem:[#allocation5 + $0x30] sm:$0xff]
        %v303 = vld [vmem:[#allocation5 + $0x38] sm:$0xff]
        %v304 = vld [vmem:[#allocation5 + $0x40] sm:$0xff]
        %v305 = vld [vmem:[#allocation5 + $0x48] sm:$0xff]
        %v306 = vld [vmem:[#allocation5 + $0x50] sm:$0xff]
        %v307 = vld [vmem:[#allocation5 + $0x58] sm:$0xff]
        %v308 = vld [vmem:[#allocation5 + $0x60] sm:$0xff]
        %v309 = vld [vmem:[#allocation5 + $0x68] sm:$0xff]
        %v310 = vld [vmem:[#allocation5 + $0x70] sm:$0xff]
        %v311 = vld [vmem:[#allocation5 + $0x78] sm:$0xff]
        %v312 = vld [vmem:[#allocation5 + $0x80] sm:$0xff]
        %v313 = vld [vmem:[#allocation5 + $0x88] sm:$0xff]
        %v314 = vld [vmem:[#allocation5 + $0x90] sm:$0xff]
        %v315 = vld [vmem:[#allocation5 + $0x98] sm:$0xff]
        %v316 = vld [vmem:[#allocation5 + $0xa0] sm:$0xff]
        %v317 = vld [vmem:[#allocation5 + $0xa8] sm:$0xff]
        %v318 = vld [vmem:[#allocation5 + $0xb0] sm:$0xff]
        %v319 = vld [vmem:[#allocation5 + $0xb8] sm:$0xff]
        %v320 = vld [vmem:[#allocation5 + $0xc0] sm:$0xff]
        %v321 = vld [vmem:[#allocation5 + $0xc8] sm:$0xff]
        %v322 = vld [vmem:[#allocation5 + $0xd0] sm:$0xff]
        %v323 = vld [vmem:[#allocation5 + $0xd8] sm:$0xff]
        %v324 = vld [vmem:[#allocation5 + $0xe0] sm:$0xff]
        %v325 = vld [vmem:[#allocation5 + $0xe8] sm:$0xff]
        %v326 = vld [vmem:[#allocation5 + $0xf0] sm:$0xff]
        %v327 = vld [vmem:[#allocation5 + $0xf8] sm:$0xff]
        %v328 = vld [vmem:[%s229] sm:$0xff]
        %v329 = vld [vmem:[%s229 + $0x8] sm:$0xff]
        %v330 = vld [vmem:[%s229 + $0x10] sm:$0xff]
        %v331 = vld [vmem:[%s229 + $0x18] sm:$0xff]
        %v332 = vld [vmem:[%s229 + $0x20] sm:$0xff]
        %v333 = vld [vmem:[%s229 + $0x28] sm:$0xff]
        %v334 = vld [vmem:[%s229 + $0x30] sm:$0xff]
        %v335 = vld [vmem:[%s229 + $0x38] sm:$0xff]
        %v336 = vld [vmem:[%s229 + $0x40] sm:$0xff]
        %v337 = vld [vmem:[%s229 + $0x48] sm:$0xff]
        %v338 = vld [vmem:[%s229 + $0x50] sm:$0xff]
        %v339 = vld [vmem:[%s229 + $0x58] sm:$0xff]
        %v340 = vld [vmem:[%s229 + $0x60] sm:$0xff]
        %v341 = vld [vmem:[%s229 + $0x68] sm:$0xff]
        %v342 = vld [vmem:[%s229 + $0x70] sm:$0xff]
        %v343 = vld [vmem:[%s229 + $0x78] sm:$0xff]
        %v344 = vld [vmem:[%s229 + $0x80] sm:$0xff]
        %v345 = vld [vmem:[%s229 + $0x88] sm:$0xff]
        %v346 = vld [vmem:[%s229 + $0x90] sm:$0xff]
        %v347 = vld [vmem:[%s229 + $0x98] sm:$0xff]
        %v348 = vld [vmem:[%s229 + $0xa0] sm:$0xff]
        %v349 = vld [vmem:[%s229 + $0xa8] sm:$0xff]
        %v350 = vld [vmem:[%s229 + $0xb0] sm:$0xff]
        %v351 = vld [vmem:[%s229 + $0xb8] sm:$0xff]
        %v352 = vld [vmem:[%s229 + $0xc0] sm:$0xff]
        %v353 = vld [vmem:[%s229 + $0xc8] sm:$0xff]
        %v354 = vld [vmem:[%s229 + $0xd0] sm:$0xff]
        %v355 = vld [vmem:[%s229 + $0xd8] sm:$0xff]
        %v356 = vld [vmem:[%s229 + $0xe0] sm:$0xff]
        %v357 = vld [vmem:[%s229 + $0xe8] sm:$0xff]
        %v358 = vld [vmem:[%s229 + $0xf0] sm:$0xff]
        %v359 = vld [vmem:[%s229 + $0xf8] sm:$0xff]
        %v360 = vld [vmem:[%s229 + $0x100] sm:$0xff]
        %v361 = vld [vmem:[%s229 + $0x108] sm:$0xff]
        %v362 = vld [vmem:[%s229 + $0x110] sm:$0xff]
        %v363 = vld [vmem:[%s229 + $0x118] sm:$0xff]
        %v364 = vld [vmem:[%s229 + $0x120] sm:$0xff]
        %v365 = vld [vmem:[%s229 + $0x128] sm:$0xff]
        %v366 = vld [vmem:[%s229 + $0x130] sm:$0xff]
        %v367 = vld [vmem:[%s229 + $0x138] sm:$0xff]
        %v368 = vld [vmem:[%s229 + $0x140] sm:$0xff]
        %v369 = vld [vmem:[%s229 + $0x148] sm:$0xff]
        %v370 = vld [vmem:[%s229 + $0x150] sm:$0xff]
        %v371 = vld [vmem:[%s229 + $0x158] sm:$0xff]
        %v372 = vld [vmem:[%s229 + $0x160] sm:$0xff]
        %v373 = vld [vmem:[%s229 + $0x168] sm:$0xff]
        %v374 = vld [vmem:[%s229 + $0x170] sm:$0xff]
        %v375 = vld [vmem:[%s229 + $0x178] sm:$0xff]
        %v376 = vld [vmem:[%s229 + $0x180] sm:$0xff]
        %v377 = vld [vmem:[%s229 + $0x188] sm:$0xff]
        %v378 = vld [vmem:[%s229 + $0x190] sm:$0xff]
        %v379 = vld [vmem:[%s229 + $0x198] sm:$0xff]
        %v380 = vld [vmem:[%s229 + $0x1a0] sm:$0xff]
        %v381 = vld [vmem:[%s229 + $0x1a8] sm:$0xff]
        %v382 = vld [vmem:[%s229 + $0x1b0] sm:$0xff]
        %v383 = vld [vmem:[%s229 + $0x1b8] sm:$0xff]
        %v384 = vld [vmem:[%s229 + $0x1c0] sm:$0xff]
        %v385 = vld [vmem:[%s229 + $0x1c8] sm:$0xff]
        %v386 = vld [vmem:[%s229 + $0x1d0] sm:$0xff]
        %v387 = vld [vmem:[%s229 + $0x1d8] sm:$0xff]
        %v388 = vld [vmem:[%s229 + $0x1e0] sm:$0xff]
        %v389 = vld [vmem:[%s229 + $0x1e8] sm:$0xff]
        %v390 = vld [vmem:[%s229 + $0x1f0] sm:$0xff]
        %v391 = vld [vmem:[%s229 + $0x1f8] sm:$0xff]
        %392 = vmatprep.subr.mxu0 %v329
        %393 = vmatpush1.msra.mxu0 %v328
        %394 = vmatprep.subr.mxu0 %v331
        %395 = vmatpush1.msra.mxu0 %v330
        %396 = vmatprep.subr.mxu0 %v333
        %397 = vmatpush1.msra.mxu0 %v332
        %398 = vmatprep.subr.mxu0 %v335
        %399 = vmatpush1.msra.mxu0 %v334
        %400 = vmatprep.subr.mxu0 %v337
        %401 = vmatpush1.msra.mxu0 %v336
        %402 = vmatprep.subr.mxu0 %v339
        %403 = vmatpush1.msra.mxu0 %v338
        %404 = vmatprep.subr.mxu0 %v341
        %405 = vmatpush1.msra.mxu0 %v340
        %406 = vmatprep.subr.mxu0 %v343
        %407 = vmatpush1.msra.mxu0 %v342
        %408 = vmatprep.subr.mxu0 %v345
        %409 = vmatpush1.msra.mxu0 %v344
        %410 = vmatprep.subr.mxu0 %v347
        %411 = vmatpush1.msra.mxu0 %v346
        %412 = vmatprep.subr.mxu0 %v349
        %413 = vmatpush1.msra.mxu0 %v348
        %414 = vmatprep.subr.mxu0 %v351
        %415 = vmatpush1.msra.mxu0 %v350
        %416 = vmatprep.subr.mxu0 %v353
        %417 = vmatpush1.msra.mxu0 %v352
        %418 = vmatprep.subr.mxu0 %v355
        %419 = vmatpush1.msra.mxu0 %v354
        %420 = vmatprep.subr.mxu0 %v357
        %421 = vmatpush1.msra.mxu0 %v356
        %422 = vmatprep.subr.mxu0 %v359
        %423 = vmatpush1.msra.mxu0 %v358
        %424 = vmatprep.subr.mxu0 %v361
        %425 = vmatpush1.msra.mxu0 %v360
        %426 = vmatprep.subr.mxu0 %v363
        %427 = vmatpush1.msra.mxu0 %v362
        %428 = vmatprep.subr.mxu0 %v365
        %429 = vmatpush1.msra.mxu0 %v364
        %430 = vmatprep.subr.mxu0 %v367
        %431 = vmatpush1.msra.mxu0 %v366
        %432 = vmatprep.subr.mxu0 %v369
        %433 = vmatpush1.msra.mxu0 %v368
        %434 = vmatprep.subr.mxu0 %v371
        %435 = vmatpush1.msra.mxu0 %v370
        %436 = vmatprep.subr.mxu0 %v373
        %437 = vmatpush1.msra.mxu0 %v372
        %438 = vmatprep.subr.mxu0 %v375
        %439 = vmatpush1.msra.mxu0 %v374
        %440 = vmatprep.subr.mxu0 %v377
        %441 = vmatpush1.msra.mxu0 %v376
        %442 = vmatprep.subr.mxu0 %v379
        %443 = vmatpush1.msra.mxu0 %v378
        %444 = vmatprep.subr.mxu0 %v381
        %445 = vmatpush1.msra.mxu0 %v380
        %446 = vmatprep.subr.mxu0 %v383
        %447 = vmatpush1.msra.mxu0 %v382
        %448 = vmatprep.subr.mxu0 %v385
        %449 = vmatpush1.msra.mxu0 %v384
        %450 = vmatprep.subr.mxu0 %v387
        %451 = vmatpush1.msra.mxu0 %v386
        %452 = vmatprep.subr.mxu0 %v389
        %453 = vmatpush1.msra.mxu0 %v388
        %454 = vmatprep.subr.mxu0 %v391
        %455 = vmatpush1.msra.mxu0 %v390
        %456 = vmatprep.mubr.f32.mxu0 %v297
        %457 = vmatmul.mubr.f32.gmra.mrb[0].mxu0 %v296
        %v458 = vpop.f32.mrb[0].mxu0
        %v459 = vadd.f32 0.0, %v458
        %v460 = vpop.f32.mrb[0].mxu0
        %v461 = vadd.f32 0.0, %v460
        %462 = vmatprep.mubr.f32.mxu0 %v299
        %463 = vmatmul.mubr.f32.gmra.mrb[0].mxu0 %v298
        %v464 = vpop.f32.mrb[0].mxu0
        %v465 = vadd.f32 0.0, %v464
        %v466 = vpop.f32.mrb[0].mxu0
        %v467 = vadd.f32 0.0, %v466
        %468 = vmatprep.mubr.f32.mxu0 %v301
        %469 = vmatmul.mubr.f32.gmra.mrb[0].mxu0 %v300
        %v470 = vpop.f32.mrb[0].mxu0
        %v471 = vadd.f32 0.0, %v470
        %v472 = vpop.f32.mrb[0].mxu0
        %v473 = vadd.f32 0.0, %v472
        %474 = vmatprep.mubr.f32.mxu0 %v303
        %475 = vmatmul.mubr.f32.gmra.mrb[0].mxu0 %v302
        %v476 = vpop.f32.mrb[0].mxu0
        %v477 = vadd.f32 0.0, %v476
        %v478 = vpop.f32.mrb[0].mxu0
        %v479 = vadd.f32 0.0, %v478
        %480 = vmatprep.mubr.f32.mxu0 %v305
        %481 = vmatmul.mubr.f32.gmra.mrb[0].mxu0 %v304
        %v482 = vpop.f32.mrb[0].mxu0
        %v483 = vadd.f32 0.0, %v482
        %v484 = vpop.f32.mrb[0].mxu0
        %v485 = vadd.f32 0.0, %v484
        %486 = vmatprep.mubr.f32.mxu0 %v307
        %487 = vmatmul.mubr.f32.gmra.mrb[0].mxu0 %v306
        %v488 = vpop.f32.mrb[0].mxu0
        %v489 = vadd.f32 0.0, %v488
        %v490 = vpop.f32.mrb[0].mxu0
        %v491 = vadd.f32 0.0, %v490
        %492 = vmatprep.mubr.f32.mxu0 %v309
        %493 = vmatmul.mubr.f32.gmra.mrb[0].mxu0 %v308
        %v494 = vpop.f32.mrb[0].mxu0
        %v495 = vadd.f32 0.0, %v494
        %v496 = vpop.f32.mrb[0].mxu0
        %v497 = vadd.f32 0.0, %v496
        %498 = vmatprep.mubr.f32.mxu0 %v311
        %499 = vmatmul.mubr.f32.gmra.mrb[0].mxu0 %v310
        %v500 = vpop.f32.mrb[0].mxu0
        %v501 = vadd.f32 0.0, %v500
        %v502 = vpop.f32.mrb[0].mxu0
        %v503 = vadd.f32 0.0, %v502
        %504 = vmatprep.mubr.f32.mxu0 %v313
        %505 = vmatmul.mubr.f32.gmra.mrb[0].mxu0 %v312
        %v506 = vpop.f32.mrb[0].mxu0
        %v507 = vadd.f32 0.0, %v506
        %v508 = vpop.f32.mrb[0].mxu0
        %v509 = vadd.f32 0.0, %v508
        %510 = vmatprep.mubr.f32.mxu0 %v315
        %511 = vmatmul.mubr.f32.gmra.mrb[0].mxu0 %v314
        %v512 = vpop.f32.mrb[0].mxu0
        %v513 = vadd.f32 0.0, %v512
        %v514 = vpop.f32.mrb[0].mxu0
        %v515 = vadd.f32 0.0, %v514
        %516 = vmatprep.mubr.f32.mxu0 %v317
        %517 = vmatmul.mubr.f32.gmra.mrb[0].mxu0 %v316
        %v518 = vpop.f32.mrb[0].mxu0
        %v519 = vadd.f32 0.0, %v518
        %v520 = vpop.f32.mrb[0].mxu0
        %v521 = vadd.f32 0.0, %v520
        %522 = vmatprep.mubr.f32.mxu0 %v319
        %523 = vmatmul.mubr.f32.gmra.mrb[0].mxu0 %v318
        %v524 = vpop.f32.mrb[0].mxu0
        %v525 = vadd.f32 0.0, %v524
        %v526 = vpop.f32.mrb[0].mxu0
        %v527 = vadd.f32 0.0, %v526
        %528 = vmatprep.mubr.f32.mxu0 %v321
        %529 = vmatmul.mubr.f32.gmra.mrb[0].mxu0 %v320
        %v530 = vpop.f32.mrb[0].mxu0
        %v531 = vadd.f32 0.0, %v530
        %v532 = vpop.f32.mrb[0].mxu0
        %v533 = vadd.f32 0.0, %v532
        %534 = vmatprep.mubr.f32.mxu0 %v323
        %535 = vmatmul.mubr.f32.gmra.mrb[0].mxu0 %v322
        %v536 = vpop.f32.mrb[0].mxu0
        %v537 = vadd.f32 0.0, %v536
        %v538 = vpop.f32.mrb[0].mxu0
        %v539 = vadd.f32 0.0, %v538
        %540 = vmatprep.mubr.f32.mxu0 %v325
        %541 = vmatmul.mubr.f32.gmra.mrb[0].mxu0 %v324
        %v542 = vpop.f32.mrb[0].mxu0
        %v543 = vadd.f32 0.0, %v542
        %v544 = vpop.f32.mrb[0].mxu0
        %v545 = vadd.f32 0.0, %v544
        %546 = vmatprep.mubr.f32.mxu0 %v327
        %547 = vmatmul.mubr.f32.gmra.mrb[0].mxu0 %v326
        %v548 = vpop.f32.mrb[0].mxu0
        %v549 = vadd.f32 0.0, %v548
        %v550 = vpop.f32.mrb[0].mxu0
        %v551 = vadd.f32 0.0, %v550
        %552 = vdwg.mxu0
        %553 = vst [vmem:[%s253] sm:$0xff] %v459
        %554 = vst [vmem:[%s253 + $0x8] sm:$0xff] %v461
        %555 = vst [vmem:[%s253 + $0x10] sm:$0xff] %v465
        %556 = vst [vmem:[%s253 + $0x18] sm:$0xff] %v467
        %557 = vst [vmem:[%s253 + $0x20] sm:$0xff] %v471
        %558 = vst [vmem:[%s253 + $0x28] sm:$0xff] %v473
        %559 = vst [vmem:[%s253 + $0x30] sm:$0xff] %v477
        %560 = vst [vmem:[%s253 + $0x38] sm:$0xff] %v479
        %561 = vst [vmem:[%s253 + $0x40] sm:$0xff] %v483
        %562 = vst [vmem:[%s253 + $0x48] sm:$0xff] %v485
        %563 = vst [vmem:[%s253 + $0x50] sm:$0xff] %v489
        %564 = vst [vmem:[%s253 + $0x58] sm:$0xff] %v491
        %565 = vst [vmem:[%s253 + $0x60] sm:$0xff] %v495
        %566 = vst [vmem:[%s253 + $0x68] sm:$0xff] %v497
        %567 = vst [vmem:[%s253 + $0x70] sm:$0xff] %v501
        %568 = vst [vmem:[%s253 + $0x78] sm:$0xff] %v503
        %569 = vst [vmem:[%s253 + $0x80] sm:$0xff] %v507
        %570 = vst [vmem:[%s253 + $0x88] sm:$0xff] %v509
        %571 = vst [vmem:[%s253 + $0x90] sm:$0xff] %v513
        %572 = vst [vmem:[%s253 + $0x98] sm:$0xff] %v515
        %573 = vst [vmem:[%s253 + $0xa0] sm:$0xff] %v519
        %574 = vst [vmem:[%s253 + $0xa8] sm:$0xff] %v521
        %575 = vst [vmem:[%s253 + $0xb0] sm:$0xff] %v525
        %576 = vst [vmem:[%s253 + $0xb8] sm:$0xff] %v527
        %577 = vst [vmem:[%s253 + $0xc0] sm:$0xff] %v531
        %578 = vst [vmem:[%s253 + $0xc8] sm:$0xff] %v533
        %579 = vst [vmem:[%s253 + $0xd0] sm:$0xff] %v537
        %580 = vst [vmem:[%s253 + $0xd8] sm:$0xff] %v539
        %581 = vst [vmem:[%s253 + $0xe0] sm:$0xff] %v543
        %582 = vst [vmem:[%s253 + $0xe8] sm:$0xff] %v545
        %583 = vst [vmem:[%s253 + $0xf0] sm:$0xff] %v549
        %584 = vst [vmem:[%s253 + $0xf8] sm:$0xff] %v551
        %v585 = vadd.f32 %v459, %v461
        %586 = vadd.xlane.f32.xlu0 %v585
        %v587 = vpop.xlane.xlu0 %586
        %v588 = vadd.f32 %v465, %v467
        %589 = vadd.xlane.f32.xlu0 %v588
        %v590 = vpop.xlane.xlu0 %589
        %v591 = vadd.f32 %v471, %v473
        %592 = vadd.xlane.f32.xlu0 %v591
        %v593 = vpop.xlane.xlu0 %592
        %v594 = vadd.f32 %v477, %v479
        %595 = vadd.xlane.f32.xlu0 %v594
        %v596 = vpop.xlane.xlu0 %595
        %v597 = vadd.f32 %v483, %v485
        %598 = vadd.xlane.f32.xlu0 %v597
        %v599 = vpop.xlane.xlu0 %598
        %v600 = vadd.f32 %v489, %v491
        %601 = vadd.xlane.f32.xlu0 %v600
        %v602 = vpop.xlane.xlu0 %601
        %v603 = vadd.f32 %v495, %v497
        %604 = vadd.xlane.f32.xlu0 %v603
        %v605 = vpop.xlane.xlu0 %604
        %v606 = vadd.f32 %v501, %v503
        %607 = vadd.xlane.f32.xlu0 %v606
        %v608 = vpop.xlane.xlu0 %607
        %v609 = vadd.f32 %v507, %v509
        %610 = vadd.xlane.f32.xlu0 %v609
        %v611 = vpop.xlane.xlu0 %610
        %v612 = vadd.f32 %v513, %v515
        %613 = vadd.xlane.f32.xlu0 %v612
        %v614 = vpop.xlane.xlu0 %613
        %v615 = vadd.f32 %v519, %v521
        %616 = vadd.xlane.f32.xlu0 %v615
        %v617 = vpop.xlane.xlu0 %616
        %v618 = vadd.f32 %v525, %v527
        %619 = vadd.xlane.f32.xlu0 %v618
        %v620 = vpop.xlane.xlu0 %619
        %v621 = vadd.f32 %v531, %v533
        %622 = vadd.xlane.f32.xlu0 %v621
        %v623 = vpop.xlane.xlu0 %622
        %v624 = vadd.f32 %v537, %v539
        %625 = vadd.xlane.f32.xlu0 %v624
        %v626 = vpop.xlane.xlu0 %625
        %v627 = vadd.f32 %v543, %v545
        %628 = vadd.xlane.f32.xlu0 %v627
        %v629 = vpop.xlane.xlu0 %628
        %v630 = vadd.f32 %v549, %v551
        %631 = vadd.xlane.f32.xlu0 %v630
        %v632 = vpop.xlane.xlu0 %631
        %vm633 = vcmask 7168
        %634 = vst.msk [vmem:[%s286] sm:$0xff] %vm633, %v587
        %635 = vst.msk [vmem:[%s286 + $0x8] sm:$0xff] %vm633, %v590
        %636 = vst.msk [vmem:[%s286 + $0x10] sm:$0xff] %vm633, %v593
        %637 = vst.msk [vmem:[%s286 + $0x18] sm:$0xff] %vm633, %v596
        %638 = vst.msk [vmem:[%s286 + $0x20] sm:$0xff] %vm633, %v599
        %639 = vst.msk [vmem:[%s286 + $0x28] sm:$0xff] %vm633, %v602
        %640 = vst.msk [vmem:[%s286 + $0x30] sm:$0xff] %vm633, %v605
        %641 = vst.msk [vmem:[%s286 + $0x38] sm:$0xff] %vm633, %v608
        %642 = vst.msk [vmem:[%s286 + $0x40] sm:$0xff] %vm633, %v611
        %643 = vst.msk [vmem:[%s286 + $0x48] sm:$0xff] %vm633, %v614
        %644 = vst.msk [vmem:[%s286 + $0x50] sm:$0xff] %vm633, %v617
        %645 = vst.msk [vmem:[%s286 + $0x58] sm:$0xff] %vm633, %v620
        %646 = vst.msk [vmem:[%s286 + $0x60] sm:$0xff] %vm633, %v623
        %647 = vst.msk [vmem:[%s286 + $0x68] sm:$0xff] %vm633, %v626
        %648 = vst.msk [vmem:[%s286 + $0x70] sm:$0xff] %vm633, %v629
        %649 = vst.msk [vmem:[%s286 + $0x78] sm:$0xff] %vm633, %v632
        %v650 = vmul.f32 %v459, %v459
        %v651 = vmul.f32 %v461, %v461
        %v652 = vmul.f32 %v465, %v465
        %v653 = vmul.f32 %v467, %v467
        %v654 = vmul.f32 %v471, %v471
        %v655 = vmul.f32 %v473, %v473
        %v656 = vmul.f32 %v477, %v477
        %v657 = vmul.f32 %v479, %v479
        %v658 = vmul.f32 %v483, %v483
        %v659 = vmul.f32 %v485, %v485
        %v660 = vmul.f32 %v489, %v489
        %v661 = vmul.f32 %v491, %v491
        %v662 = vmul.f32 %v495, %v495
        %v663 = vmul.f32 %v497, %v497
        %v664 = vmul.f32 %v501, %v501
        %v665 = vmul.f32 %v503, %v503
        %v666 = vmul.f32 %v507, %v507
        %v667 = vmul.f32 %v509, %v509
        %v668 = vmul.f32 %v513, %v513
        %v669 = vmul.f32 %v515, %v515
        %v670 = vmul.f32 %v519, %v519
        %v671 = vmul.f32 %v521, %v521
        %v672 = vmul.f32 %v525, %v525
        %v673 = vmul.f32 %v527, %v527
        %v674 = vmul.f32 %v531, %v531
        %v675 = vmul.f32 %v533, %v533
        %v676 = vmul.f32 %v537, %v537
        %v677 = vmul.f32 %v539, %v539
        %v678 = vmul.f32 %v543, %v543
        %v679 = vmul.f32 %v545, %v545
        %v680 = vmul.f32 %v549, %v549
        %v681 = vmul.f32 %v551, %v551
        %v682 = vadd.f32 %v650, %v651
        %683 = vadd.xlane.f32.xlu0 %v682
        %v684 = vpop.xlane.xlu0 %683
        %v685 = vadd.f32 %v652, %v653
        %686 = vadd.xlane.f32.xlu0 %v685
        %v687 = vpop.xlane.xlu0 %686
        %v688 = vadd.f32 %v654, %v655
        %689 = vadd.xlane.f32.xlu0 %v688
        %v690 = vpop.xlane.xlu0 %689
        %v691 = vadd.f32 %v656, %v657
        %692 = vadd.xlane.f32.xlu0 %v691
        %v693 = vpop.xlane.xlu0 %692
        %v694 = vadd.f32 %v658, %v659
        %695 = vadd.xlane.f32.xlu0 %v694
        %v696 = vpop.xlane.xlu0 %695
        %v697 = vadd.f32 %v660, %v661
        %698 = vadd.xlane.f32.xlu0 %v697
        %v699 = vpop.xlane.xlu0 %698
        %v700 = vadd.f32 %v662, %v663
        %701 = vadd.xlane.f32.xlu0 %v700
        %v702 = vpop.xlane.xlu0 %701
        %v703 = vadd.f32 %v664, %v665
        %704 = vadd.xlane.f32.xlu0 %v703
        %v705 = vpop.xlane.xlu0 %704
        %v706 = vadd.f32 %v666, %v667
        %707 = vadd.xlane.f32.xlu0 %v706
        %v708 = vpop.xlane.xlu0 %707
        %v709 = vadd.f32 %v668, %v669
        %710 = vadd.xlane.f32.xlu0 %v709
        %v711 = vpop.xlane.xlu0 %710
        %v712 = vadd.f32 %v670, %v671
        %713 = vadd.xlane.f32.xlu0 %v712
        %v714 = vpop.xlane.xlu0 %713
        %v715 = vadd.f32 %v672, %v673
        %716 = vadd.xlane.f32.xlu0 %v715
        %v717 = vpop.xlane.xlu0 %716
        %v718 = vadd.f32 %v674, %v675
        %719 = vadd.xlane.f32.xlu0 %v718
        %v720 = vpop.xlane.xlu0 %719
        %v721 = vadd.f32 %v676, %v677
        %722 = vadd.xlane.f32.xlu0 %v721
        %v723 = vpop.xlane.xlu0 %722
        %v724 = vadd.f32 %v678, %v679
        %725 = vadd.xlane.f32.xlu0 %v724
        %v726 = vpop.xlane.xlu0 %725
        %v727 = vadd.f32 %v680, %v681
        %728 = vadd.xlane.f32.xlu0 %v727
        %v729 = vpop.xlane.xlu0 %728
        %730 = vst.msk [vmem:[%s295] sm:$0xff] %vm633, %v684
        %731 = vst.msk [vmem:[%s295 + $0x8] sm:$0xff] %vm633, %v687
        %732 = vst.msk [vmem:[%s295 + $0x10] sm:$0xff] %vm633, %v690
        %733 = vst.msk [vmem:[%s295 + $0x18] sm:$0xff] %vm633, %v693
        %734 = vst.msk [vmem:[%s295 + $0x20] sm:$0xff] %vm633, %v696
        %735 = vst.msk [vmem:[%s295 + $0x28] sm:$0xff] %vm633, %v699
        %736 = vst.msk [vmem:[%s295 + $0x30] sm:$0xff] %vm633, %v702
        %737 = vst.msk [vmem:[%s295 + $0x38] sm:$0xff] %vm633, %v705
        %738 = vst.msk [vmem:[%s295 + $0x40] sm:$0xff] %vm633, %v708
        %739 = vst.msk [vmem:[%s295 + $0x48] sm:$0xff] %vm633, %v711
        %740 = vst.msk [vmem:[%s295 + $0x50] sm:$0xff] %vm633, %v714
        %741 = vst.msk [vmem:[%s295 + $0x58] sm:$0xff] %vm633, %v717
        %742 = vst.msk [vmem:[%s295 + $0x60] sm:$0xff] %vm633, %v720
        %743 = vst.msk [vmem:[%s295 + $0x68] sm:$0xff] %vm633, %v723
        %744 = vst.msk [vmem:[%s295 + $0x70] sm:$0xff] %vm633, %v726
        %745 = vst.msk [vmem:[%s295 + $0x78] sm:$0xff] %vm633, %v729
        %s746 = sand.u32 %s94, 1
        %s747 = scalar_lea.sflag [#allocation4], %s746
        %s748 = sand.u32 %s94, 1
        %s749 = smul.addr %s748, 256
        %s750 = scalar_lea.vmem [#allocation7], %s749
        %p751 = scmp.lt.s32.totalorder %s27, 1
        %s752 = scalar_select %p751, %s27, 1
        %p753 = scmp.lt.s32.totalorder %s28, 0
        %s754 = scalar_select %p753, %s28, 0
        %s755 = smul.addr %s754, 16
        %s756 = smul.addr %s752, 16
        %s757 = sadd.s32 %s755, %s756
        %s758 = smul.addr %s757, 8
        %s759 = scalar_lea.vmem %s3, %s758
        %p760 = scmp.lt.s32.totalorder %s27, 1
        %s761 = scalar_select %p760, %s27, 1
        %p762 = scmp.lt.s32.totalorder %s28, 0
        %s763 = scalar_select %p762, %s28, 0
        %s764 = smul.addr %s763, 16
        %s765 = smul.addr %s761, 16
        %s766 = sadd.s32 %s764, %s765
        %s767 = smul.addr %s766, 8
        %s768 = scalar_lea.vmem %s4, %s767
        // Predicated region
        $region37: #{tpu_custom_call.1} parent=27 // pred_check
          %p769 = pneg %p104
        $region38: #{tpu_custom_call.1} parent=27 // pred_check_branch
          %771 = sbr.rel (%p769) target = $region40
        $region39: #{tpu_custom_call.1} parent=27 // pred_region
          %s772 = smul.u32 2, %s28
          %s774 = ssub.s32 4096, 4096
          %775 = vsyncadd %s747, %s774
          %s776 = smul.addr %s27, 32
          %s777 = sadd.s32 %s772, %s776
          %s778 = smul.addr %s777, 128
          %s779 = scalar_lea.hbm %s2, %s778
          %s780 = sshll.u32 %s750, 4
          %s781 = int_to_ptr.vmem [resolvable:$true] %s780
          %786 = dma.vmem_to_hbm [thread:$0]  %s781, 4096, %s779, %s747, 256, 256, 16
        $region40: #{tpu_custom_call.1} parent=27 // pred_fallthru
          _
        // Predicated region
        $region41: #{tpu_custom_call.1} parent=27 // pred_check
          %p787 = pneg %p132
        $region42: #{tpu_custom_call.1} parent=27 // pred_check_branch
          %789 = sbr.rel (%p787) target = $region44
        $region43: #{tpu_custom_call.1} parent=27 // pred_region
          _
        $region44: #{tpu_custom_call.1} parent=27 // pred_fallthru
          _
        // Predicated region
        $region45: #{tpu_custom_call.1} parent=27 // pred_check
          %p790 = pneg %p160
        $region46: #{tpu_custom_call.1} parent=27 // pred_check_branch
          %792 = sbr.rel (%p790) target = $region48
        $region47: #{tpu_custom_call.1} parent=27 // pred_region
          _
        $region48: #{tpu_custom_call.1} parent=27 // pred_fallthru
          _
      $region28: #{tpu_custom_call.1} parent=5 // pred_fallthru
        _
      %p793 = scmp.le.s32.totalorder 2, %s18
      // Predicated region
      $region49: #{tpu_custom_call.1} parent=5 // pred_check
        %p794 = pneg %p793
      $region50: #{tpu_custom_call.1} parent=5 // pred_check_branch
        %796 = sbr.rel (%p794) target = $region52
      $region51: #{tpu_custom_call.1} parent=5 // pred_region
        %s797 = ssub.s32 %s18, 2
        // Predicated region
        $region53: #{tpu_custom_call.1} parent=51 // pred_check
          %p798 = pneg %p110
        $region54: #{tpu_custom_call.1} parent=51 // pred_check_branch
          %800 = sbr.rel (%p798) target = $region56
        $region55: #{tpu_custom_call.1} parent=51 // pred_region
          %s801 = sand.u32 %s95, 1
          %s802 = scalar_lea.sflag [#allocation4], %s801
          %s803 = sand.u32 %s95, 1
          %s804 = smul.addr %s803, 256
          %s805 = scalar_lea.vmem [#allocation7], %s804
          %806 = dma.done %s802, 4096
        $region56: #{tpu_custom_call.1} parent=51 // pred_fallthru
          _
        // Predicated region
        $region57: #{tpu_custom_call.1} parent=51 // pred_check
          %p807 = pneg %p138
        $region58: #{tpu_custom_call.1} parent=51 // pred_check_branch
          %809 = sbr.rel (%p807) target = $region60
        $region59: #{tpu_custom_call.1} parent=51 // pred_region
          %p810 = scmp.lt.s32.totalorder %s29, 1
          %s811 = scalar_select %p810, %s29, 1
          %p812 = scmp.lt.s32.totalorder %s30, 0
          %s813 = scalar_select %p812, %s30, 0
          %s814 = smul.addr %s813, 16
          %s815 = smul.addr %s811, 16
          %s816 = sadd.s32 %s814, %s815
          %s817 = smul.addr %s816, 8
          %s818 = scalar_lea.vmem %s3, %s817
        $region60: #{tpu_custom_call.1} parent=51 // pred_fallthru
          _
        // Predicated region
        $region61: #{tpu_custom_call.1} parent=51 // pred_check
          %p819 = pneg %p166
        $region62: #{tpu_custom_call.1} parent=51 // pred_check_branch
          %821 = sbr.rel (%p819) target = $region64
        $region63: #{tpu_custom_call.1} parent=51 // pred_region
          %p822 = scmp.lt.s32.totalorder %s29, 1
          %s823 = scalar_select %p822, %s29, 1
          %p824 = scmp.lt.s32.totalorder %s30, 0
          %s825 = scalar_select %p824, %s30, 0
          %s826 = smul.addr %s825, 16
          %s827 = smul.addr %s823, 16
          %s828 = sadd.s32 %s826, %s827
          %s829 = smul.addr %s828, 8
          %s830 = scalar_lea.vmem %s4, %s829
        $region64: #{tpu_custom_call.1} parent=51 // pred_fallthru
          _
      $region52: #{tpu_custom_call.1} parent=5 // pred_fallthru
        _
    $region6: #{tpu_custom_call.1} parent=1 // loop_footer
      %s22 = sadd.s32 1, %s18
    $region7: #{tpu_custom_call.1} parent=1 // loop_footer_branch
      %17 = sbr.rel target = $region3
    $region8: #{tpu_custom_call.1} parent=1 // loop_exit
      _
    %831 = vsyncpa [#allocation3], 1
    %s832 = scalar_lea.sflag [#allocation3], 1
    %833 = vsyncpa %s832, 1
    %834 = vsyncpa [#allocation6], 1
    %835 = vsyncpa [#allocation4], 1
    %s836 = scalar_lea.sflag [#allocation4], 1
    %837 = vsyncpa %s836, 1

</llo_original>
